<compile_context>
chip_gen: v7x
topology: tpu7x:2x2x1
jax: 0.10.0
libtpu: 0.0.40
codegen_flags: <defaults>
</compile_context>

<pallas_src>
import math

import jax
import jax.numpy as jnp
from jax.experimental import pallas as pl
from jax.experimental.pallas import tpu as pltpu


def add3_kernel(a_ref, b_ref, c_ref, o_ref):
    # x95 = x80 + x94 ; x103 = x95 + x102  -> fused elementwise add on the VPU
    o_ref[...] = a_ref[...] + b_ref[...] + c_ref[...]


def _choose_layout(orig_shape):
    """Pick a lane-dense 2D view (rows, lanes) and a row tiling.

    Returns (rows, lanes, tile_rows, grid_n).
    """
    total = math.prod(orig_shape)
    if total % 128 == 0:
        lanes = 128
        rows = total // 128
        # Prefer a few grid steps (pipelining) with a row tile that is a
        # multiple of 8 (sublane constraint). Keep the grid small: per-step
        # overhead is significant for a ~2.4 MiB problem.
        for g in (4, 3, 2):
            if rows % g == 0 and (rows // g) % 8 == 0:
                return rows, lanes, rows // g, g
        # Fall back to one full-extent block (always legal).
        return rows, lanes, rows, 1
    # Element count not a multiple of 128: keep the original channel-last
    # 2D view as a single full-extent block.
    lanes = orig_shape[-1]
    rows = total // lanes
    return rows, lanes, rows, 1


def add3(x80, x94, x102):
    assert x80.shape == x94.shape == x102.shape
    assert x80.dtype == x94.dtype == x102.dtype
    orig_shape = x80.shape

    rows, lanes, tile_rows, grid_n = _choose_layout(orig_shape)

    # Elementwise op: any same reshape of all operands preserves semantics.
    a2 = x80.reshape(rows, lanes)
    b2 = x94.reshape(rows, lanes)
    c2 = x102.reshape(rows, lanes)

    spec = pl.BlockSpec((tile_rows, lanes), lambda i: (i, 0))

    out2 = pl.pallas_call(
        add3_kernel,
        out_shape=jax.ShapeDtypeStruct((rows, lanes), x80.dtype),
        grid=(grid_n,),
        in_specs=[spec, spec, spec],
        out_specs=spec,
        compiler_params=pltpu.CompilerParams(
            dimension_semantics=("parallel",)
        ),
    )(a2, b2, c2)

    return out2.reshape(orig_shape)


if __name__ == "__main__":
    key = jax.random.PRNGKey(0)
    k1, k2, k3 = jax.random.split(key, 3)
    shape = (1, 28, 28, 192)  # same shape the PyTorch module uses
    x80 = jax.random.normal(k1, shape, dtype=jnp.float32)
    x94 = jax.random.normal(k2, shape, dtype=jnp.float32)
    x102 = jax.random.normal(k3, shape, dtype=jnp.float32)

    out = add3(x80, x94, x102)
    out = jax.block_until_ready(out)

    ref = x80 + x94 + x102
    assert out.shape == shape
    assert jnp.allclose(out, ref, atol=1e-6), "mismatch vs reference"
    print("KERNEL_OK")
</pallas_src>

<mosaic_0001>
module attributes {stable_mosaic.version = 11 : i64} {
  func.func @add3_kernel(%arg0: i32, %arg1: memref<392x128xf32, #tpu.memory_space<vmem>>, %arg2: memref<392x128xf32, #tpu.memory_space<vmem>>, %arg3: memref<392x128xf32, #tpu.memory_space<vmem>>, %arg4: memref<392x128xf32, #tpu.memory_space<vmem>>) attributes {dimension_semantics = [#tpu.dimension_semantics<parallel>], iteration_bounds = array<i64: 3>, scalar_prefetch = 0 : i64, scratch_operands = 0 : i64, tpu.core_type = #tpu.core_type<tc>, window_params = [{transform_indices = @transform_0, window_bounds = array<i64: 392, 128>}, {transform_indices = @transform_1, window_bounds = array<i64: 392, 128>}, {transform_indices = @transform_2, window_bounds = array<i64: 392, 128>}, {transform_indices = @transform_3, window_bounds = array<i64: 392, 128>}]} {
    %c0 = arith.constant 0 : index
    %c0_0 = arith.constant 0 : index
    %0 = vector.load %arg1[%c0, %c0_0] : memref<392x128xf32, #tpu.memory_space<vmem>>, vector<392x128xf32>
    %c0_1 = arith.constant 0 : index
    %c0_2 = arith.constant 0 : index
    %1 = vector.load %arg2[%c0_1, %c0_2] : memref<392x128xf32, #tpu.memory_space<vmem>>, vector<392x128xf32>
    %2 = arith.addf %0, %1 : vector<392x128xf32>
    %c0_3 = arith.constant 0 : index
    %c0_4 = arith.constant 0 : index
    %3 = vector.load %arg3[%c0_3, %c0_4] : memref<392x128xf32, #tpu.memory_space<vmem>>, vector<392x128xf32>
    %4 = arith.addf %2, %3 : vector<392x128xf32>
    %c0_5 = arith.constant 0 : index
    %c0_6 = arith.constant 0 : index
    %5 = vector.load %arg4[%c0_5, %c0_6] : memref<392x128xf32, #tpu.memory_space<vmem>>, vector<392x128xf32>
    tpu.vector_store %arg4[%c0_5, %c0_6], %4 {strides = array<i32>} : memref<392x128xf32, #tpu.memory_space<vmem>>, vector<392x128xf32>,
    return
  }
  func.func @transform_0(%arg0: i32) -> (i32, i32) {
    %c0_i32 = arith.constant 0 : i32
    %c0_i32_0 = arith.constant 0 : i32
    return %arg0, %c0_i32 : i32, i32
  }
  func.func @transform_1(%arg0: i32) -> (i32, i32) {
    %c0_i32 = arith.constant 0 : i32
    %c0_i32_0 = arith.constant 0 : i32
    return %arg0, %c0_i32 : i32, i32
  }
  func.func @transform_2(%arg0: i32) -> (i32, i32) {
    %c0_i32 = arith.constant 0 : i32
    %c0_i32_0 = arith.constant 0 : i32
    return %arg0, %c0_i32 : i32, i32
  }
  func.func @transform_3(%arg0: i32) -> (i32, i32) {
    %c0_i32 = arith.constant 0 : i32
    %c0_i32_0 = arith.constant 0 : i32
    return %arg0, %c0_i32 : i32, i32
  }
}

</mosaic_0001>

<llo_original>
// kernel: tpu_custom_call.1
$region0: #{tpu_custom_call.1}
  #allocation0 [shape = 'u32[]', space=smem, size = 0x4, offset = 0x4, fixed_abs, tag = 'smem constant byte address 0x4 - core index']
  #allocation1 [shape = 'u32[144,128]{1,0:T(1,128)}', space=vmem, size = 0x12000, scoped, tag = 'internal scratch']
  %s0 = inlined_call_operand.hbm [shape: f32[1176,128], index: 0, kind: input, shape index: {}]
  %s1 = inlined_call_operand.hbm [shape: f32[1176,128], index: 1, kind: input, shape index: {}]
  %s2 = inlined_call_operand.hbm [shape: f32[1176,128], index: 2, kind: input, shape index: {}]
  %s3 = inlined_call_operand.hbm [shape: f32[1176,128], index: 3, kind: output, shape index: {}]
  %s4 = sld [smem:[#allocation0]]
  $region57: #{tpu_custom_call.1} parent=0
    _
  %s6 = ssub.s32 1, %s4
  %s7 = scalar_select 0, %s6, %s4
  $region1: #{tpu_custom_call.1} parent=0
    #allocation2 [shape = 'u8[401408]{0}', space=vmem, size = 0x62000, scoped, tag = 'input window, operand 0']
    #allocation3 [shape = 's32[2]{0}', space=sflag, size = 0x8, scoped, tag = 'scoped memory for tpu_custom_call.1']
    #allocation4 [shape = 's32[2]{0}', space=sflag, size = 0x8, scoped, tag = 'scoped memory for tpu_custom_call.1']
    #allocation5 [shape = 'u8[401408]{0}', space=vmem, size = 0x62000, scoped, tag = 'input window, operand 1']
    #allocation6 [shape = 's32[2]{0}', space=sflag, size = 0x8, scoped, tag = 'scoped memory for tpu_custom_call.1']
    #allocation7 [shape = 'u8[401408]{0}', space=vmem, size = 0x62000, scoped, tag = 'input window, operand 2']
    #allocation8 [shape = 'u8[401408]{0}', space=vmem, size = 0x62000, scoped, tag = 'output window, operand 0']
    %8 = vsyncpa [#allocation3], 0
    %s9 = scalar_lea.sflag [#allocation3], 1
    %10 = vsyncpa %s9, 0
    %11 = vsyncpa [#allocation6], 0
    %s12 = scalar_lea.sflag [#allocation6], 1
    %13 = vsyncpa %s12, 0
    %14 = vsyncpa [#allocation4], 0
    %s15 = scalar_lea.sflag [#allocation4], 1
    %16 = vsyncpa %s15, 0
    loop: start=0, step=1, limit=5
    $region2: #{tpu_custom_call.1} parent=1 // loop_pre_header
      _
    $region3: #{tpu_custom_call.1} parent=1 // loop_header
      %s18 = sphi 0, %s22
      %p19 = scmp.ge.s32.totalorder %s18, 5
      %s28 = sphi 0, %s30
      %s31 = sphi 0, %s28
      %s32 = sphi 0, %s31
      %s48 = sphi 0, %s32
      %s54 = sphi 0, %s56
      %s57 = sphi 0, %s54
      %s58 = sphi 0, %s57
      %s74 = sphi 0, %s58
      %s80 = sphi 0, %s82
      %s83 = sphi 0, %s80
      %s84 = sphi 0, %s83
      %s100 = sphi 0, %s84
      %s106 = sphi 0, %s108
      %s109 = sphi 0, %s106
      %s110 = sphi 0, %s109
      %s126 = sphi 0, %s110
    $region4: #{tpu_custom_call.1} parent=1 // loop_header_branch
      %21 = sbr.rel (%p19) target = $region8
    $region5: #{tpu_custom_call.1} parent=1 // loop_body
      %s23 = ssub.s32 %s18, 1
      %s24 = ssub.s32 %s18, 2
      %s25 = sadd.s32 %s18, 1
      %s26 = ssub.s32 %s18, %s25
      %p27 = scmp.eq.s32.totalorder %s26, 0
      %s29 = sadd.s32 %s28, 1
      %s30 = scalar_select %p27, %s28, %s29
      %p33 = pneg %p27
      %p34 = scmp.eq.s32.totalorder %s18, 2
      %p35 = por %p33, %p34
      %p36 = scmp.ne.s32.totalorder %s28, %s31
      %p37 = scmp.eq.s32.totalorder %s18, 0
      %p38 = por %p36, %p37
      %p39 = scmp.ne.s32.totalorder %s28, %s31
      %p40 = scmp.eq.s32.totalorder %s23, 2
      %p41 = por %p39, %p40
      %p42 = scmp.ne.s32.totalorder %s31, %s32
      %p43 = scmp.eq.s32.totalorder %s23, 0
      %p44 = por %p42, %p43
      %p45 = scmp.ne.s32.totalorder %s31, %s32
      %p46 = scmp.eq.s32.totalorder %s24, 2
      %p47 = por %p45, %p46
      %p49 = scmp.ne.s32.totalorder %s32, %s48
      %p50 = scmp.eq.s32.totalorder %s24, 0
      %p51 = por %p49, %p50
      %s52 = ssub.s32 %s18, %s25
      %p53 = scmp.eq.s32.totalorder %s52, 0
      %s55 = sadd.s32 %s54, 1
      %s56 = scalar_select %p53, %s54, %s55
      %p59 = pneg %p53
      %p60 = scmp.eq.s32.totalorder %s18, 2
      %p61 = por %p59, %p60
      %p62 = scmp.ne.s32.totalorder %s54, %s57
      %p63 = scmp.eq.s32.totalorder %s18, 0
      %p64 = por %p62, %p63
      %p65 = scmp.ne.s32.totalorder %s54, %s57
      %p66 = scmp.eq.s32.totalorder %s23, 2
      %p67 = por %p65, %p66
      %p68 = scmp.ne.s32.totalorder %s57, %s58
      %p69 = scmp.eq.s32.totalorder %s23, 0
      %p70 = por %p68, %p69
      %p71 = scmp.ne.s32.totalorder %s57, %s58
      %p72 = scmp.eq.s32.totalorder %s24, 2
      %p73 = por %p71, %p72
      %p75 = scmp.ne.s32.totalorder %s58, %s74
      %p76 = scmp.eq.s32.totalorder %s24, 0
      %p77 = por %p75, %p76
      %s78 = ssub.s32 %s18, %s25
      %p79 = scmp.eq.s32.totalorder %s78, 0
      %s81 = sadd.s32 %s80, 1
      %s82 = scalar_select %p79, %s80, %s81
      %p85 = pneg %p79
      %p86 = scmp.eq.s32.totalorder %s18, 2
      %p87 = por %p85, %p86
      %p88 = scmp.ne.s32.totalorder %s80, %s83
      %p89 = scmp.eq.s32.totalorder %s18, 0
      %p90 = por %p88, %p89
      %p91 = scmp.ne.s32.totalorder %s80, %s83
      %p92 = scmp.eq.s32.totalorder %s23, 2
      %p93 = por %p91, %p92
      %p94 = scmp.ne.s32.totalorder %s83, %s84
      %p95 = scmp.eq.s32.totalorder %s23, 0
      %p96 = por %p94, %p95
      %p97 = scmp.ne.s32.totalorder %s83, %s84
      %p98 = scmp.eq.s32.totalorder %s24, 2
      %p99 = por %p97, %p98
      %p101 = scmp.ne.s32.totalorder %s84, %s100
      %p102 = scmp.eq.s32.totalorder %s24, 0
      %p103 = por %p101, %p102
      %s104 = ssub.s32 %s18, %s25
      %p105 = scmp.eq.s32.totalorder %s104, 0
      %s107 = sadd.s32 %s106, 1
      %s108 = scalar_select %p105, %s106, %s107
      %p111 = pneg %p105
      %p112 = scmp.eq.s32.totalorder %s18, 2
      %p113 = por %p111, %p112
      %p114 = scmp.ne.s32.totalorder %s106, %s109
      %p115 = scmp.eq.s32.totalorder %s18, 0
      %p116 = por %p114, %p115
      %p117 = scmp.ne.s32.totalorder %s106, %s109
      %p118 = scmp.eq.s32.totalorder %s23, 2
      %p119 = por %p117, %p118
      %p120 = scmp.ne.s32.totalorder %s109, %s110
      %p121 = scmp.eq.s32.totalorder %s23, 0
      %p122 = por %p120, %p121
      %p123 = scmp.ne.s32.totalorder %s109, %s110
      %p124 = scmp.eq.s32.totalorder %s24, 2
      %p125 = por %p123, %p124
      %p127 = scmp.ne.s32.totalorder %s110, %s126
      %p128 = scmp.eq.s32.totalorder %s24, 0
      %p129 = por %p127, %p128
      %p130 = scmp.le.s32.totalorder 1, %s18
      %p131 = scmp.lt.s32.totalorder %s18, 4
      %p132 = pnand %p130, %p131
      %p133 = pneg %p132
      // Predicated region
      $region9: #{tpu_custom_call.1} parent=5 // pred_check
        _
      $region10: #{tpu_custom_call.1} parent=5 // pred_check_branch
        %135 = sbr.rel (%p132) target = $region12
      $region11: #{tpu_custom_call.1} parent=5 // pred_region
        %s136 = ssub.s32 %s18, 1
      $region12: #{tpu_custom_call.1} parent=5 // pred_fallthru
        _
      %p137 = scmp.lt.s32.totalorder %s18, 3
      // Predicated region
      $region13: #{tpu_custom_call.1} parent=5 // pred_check
        %p138 = pneg %p137
      $region14: #{tpu_custom_call.1} parent=5 // pred_check_branch
        %140 = sbr.rel (%p138) target = $region16
      $region15: #{tpu_custom_call.1} parent=5 // pred_region
        // Predicated region
        $region17: #{tpu_custom_call.1} parent=15 // pred_check
          %p141 = pneg %p38
        $region18: #{tpu_custom_call.1} parent=15 // pred_check_branch
          %143 = sbr.rel (%p141) target = $region20
        $region19: #{tpu_custom_call.1} parent=15 // pred_region
          %s144 = sand.u32 %s28, 1
          %s145 = scalar_lea.sflag [#allocation3], %s144
          %s146 = sand.u32 %s28, 1
          %s147 = smul.addr %s146, 392
          %s148 = scalar_lea.vmem [#allocation2], %s147
          %s149 = smul.u32 49, %s18
          %s151 = ssub.s32 6272, 6272
          %152 = vsyncadd %s145, %s151
          %s153 = smul.addr %s149, 128
          %s154 = scalar_lea.hbm %s0, %s153
          %s155 = sshll.u32 %s148, 4
          %s156 = int_to_ptr.vmem [resolvable:$true] %s155
          %161 = dma.hbm_to_vmem [thread:$0]  %s154, 6272, %s156, %s145, 128, 128, 8
        $region20: #{tpu_custom_call.1} parent=15 // pred_fallthru
          _
        // Predicated region
        $region21: #{tpu_custom_call.1} parent=15 // pred_check
          %p162 = pneg %p64
        $region22: #{tpu_custom_call.1} parent=15 // pred_check_branch
          %164 = sbr.rel (%p162) target = $region24
        $region23: #{tpu_custom_call.1} parent=15 // pred_region
          %s165 = sand.u32 %s18, 1
          %s166 = scalar_lea.sflag [#allocation6], %s165
          %s167 = sand.u32 %s54, 1
          %s168 = smul.addr %s167, 392
          %s169 = scalar_lea.vmem [#allocation5], %s168
          %s170 = smul.u32 49, %s18
          %s172 = ssub.s32 6272, 6272
          %173 = vsyncadd %s166, %s172
          %s174 = smul.addr %s170, 128
          %s175 = scalar_lea.hbm %s1, %s174
          %s176 = sshll.u32 %s169, 4
          %s177 = int_to_ptr.vmem [resolvable:$true] %s176
          %182 = dma.hbm_to_vmem [thread:$0]  %s175, 6272, %s177, %s166, 128, 128, 8
        $region24: #{tpu_custom_call.1} parent=15 // pred_fallthru
          _
        // Predicated region
        $region25: #{tpu_custom_call.1} parent=15 // pred_check
          %p183 = pneg %p90
        $region26: #{tpu_custom_call.1} parent=15 // pred_check_branch
          %185 = sbr.rel (%p183) target = $region28
        $region27: #{tpu_custom_call.1} parent=15 // pred_region
          %s186 = sand.u32 %s18, 1
          %s187 = scalar_lea.sflag [#allocation6], %s186
          %s188 = sand.u32 %s80, 1
          %s189 = smul.addr %s188, 392
          %s190 = scalar_lea.vmem [#allocation7], %s189
          %s191 = smul.u32 49, %s18
          %s193 = ssub.s32 6272, 6272
          %194 = vsyncadd %s187, %s193
          %s195 = smul.addr %s191, 128
          %s196 = scalar_lea.hbm %s2, %s195
          %s197 = sshll.u32 %s190, 4
          %s198 = int_to_ptr.vmem [resolvable:$true] %s197
          %203 = dma.hbm_to_vmem [thread:$0]  %s196, 6272, %s198, %s187, 128, 128, 8
        $region28: #{tpu_custom_call.1} parent=15 // pred_fallthru
          _
      $region16: #{tpu_custom_call.1} parent=5 // pred_fallthru
        _
      %p204 = scmp.le.s32.totalorder 1, %s18
      %p205 = scmp.lt.s32.totalorder %s18, 4
      %p206 = pnand %p204, %p205
      %p207 = pneg %p206
      // Predicated region
      $region29: #{tpu_custom_call.1} parent=5 // pred_check
        _
      $region30: #{tpu_custom_call.1} parent=5 // pred_check_branch
        %209 = sbr.rel (%p206) target = $region32
      $region31: #{tpu_custom_call.1} parent=5 // pred_region
        %s210 = ssub.s32 %s18, 1
        %s211 = sand.u32 %s31, 1
        %s212 = scalar_lea.sflag [#allocation3], %s211
        %s213 = sand.u32 %s31, 1
        %s214 = smul.addr %s213, 392
        %s215 = scalar_lea.vmem [#allocation2], %s214
        // Predicated region
        $region33: #{tpu_custom_call.1} parent=31 // pred_check
          %p216 = pneg %p44
        $region34: #{tpu_custom_call.1} parent=31 // pred_check_branch
          %218 = sbr.rel (%p216) target = $region36
        $region35: #{tpu_custom_call.1} parent=31 // pred_region
          %219 = dma.done %s212, 6272
        $region36: #{tpu_custom_call.1} parent=31 // pred_fallthru
          _
        %s220 = sand.u32 %s23, 1
        %s221 = scalar_lea.sflag [#allocation6], %s220
        %s222 = sand.u32 %s57, 1
        %s223 = smul.addr %s222, 392
        %s224 = scalar_lea.vmem [#allocation5], %s223
        // Predicated region
        $region37: #{tpu_custom_call.1} parent=31 // pred_check
          %p225 = pneg %p70
        $region38: #{tpu_custom_call.1} parent=31 // pred_check_branch
          %227 = sbr.rel (%p225) target = $region40
        $region39: #{tpu_custom_call.1} parent=31 // pred_region
          %228 = dma.done %s221, 6272
        $region40: #{tpu_custom_call.1} parent=31 // pred_fallthru
          _
        %s229 = sand.u32 %s23, 1
        %s230 = scalar_lea.sflag [#allocation6], %s229
        %s231 = sand.u32 %s83, 1
        %s232 = smul.addr %s231, 392
        %s233 = scalar_lea.vmem [#allocation7], %s232
        // Predicated region
        $region41: #{tpu_custom_call.1} parent=31 // pred_check
          %p234 = pneg %p96
        $region42: #{tpu_custom_call.1} parent=31 // pred_check_branch
          %236 = sbr.rel (%p234) target = $region44
        $region43: #{tpu_custom_call.1} parent=31 // pred_region
          %237 = dma.done %s230, 6272
        $region44: #{tpu_custom_call.1} parent=31 // pred_fallthru
          _
        %s238 = sand.u32 %s31, 1
        %s239 = scalar_lea.sflag [#allocation3], %s238
        %s240 = sand.u32 %s31, 1
        %s241 = smul.addr %s240, 392
        %s242 = scalar_lea.vmem [#allocation2], %s241
        %p243 = pneg %p44
        %p244 = pneg %p41
        %s245 = sand.u32 %s23, 1
        %s246 = scalar_lea.sflag [#allocation6], %s245
        %s247 = sand.u32 %s57, 1
        %s248 = smul.addr %s247, 392
        %s249 = scalar_lea.vmem [#allocation5], %s248
        %p250 = pneg %p70
        %p251 = pneg %p67
        %s252 = sand.u32 %s23, 1
        %s253 = scalar_lea.sflag [#allocation6], %s252
        %s254 = sand.u32 %s83, 1
        %s255 = smul.addr %s254, 392
        %s256 = scalar_lea.vmem [#allocation7], %s255
        %p257 = pneg %p96
        %p258 = pneg %p93
        %p259 = pneg %p122
        %p260 = pneg %p119
        %s261 = sand.u32 %s109, 1
        %s262 = scalar_lea.sflag [#allocation4], %s261
        %s263 = sand.u32 %s109, 1
        %s264 = smul.addr %s263, 392
        %s265 = scalar_lea.vmem [#allocation8], %s264
        %s266 = smul.u32 49, %s23
        %s267 = smul.u32 49, %s23
        %s268 = smul.u32 49, %s23
        %s269 = smul.u32 49, %s23
        %v270 = vld [vmem:[%s215] sm:$0xff]
        %v271 = vld [vmem:[%s215 + $0x8] sm:$0xff]
        %v272 = vld [vmem:[%s215 + $0x10] sm:$0xff]
        %v273 = vld [vmem:[%s215 + $0x18] sm:$0xff]
        %v274 = vld [vmem:[%s215 + $0x20] sm:$0xff]
        %v275 = vld [vmem:[%s215 + $0x28] sm:$0xff]
        %v276 = vld [vmem:[%s215 + $0x30] sm:$0xff]
        %v277 = vld [vmem:[%s215 + $0x38] sm:$0xff]
        %v278 = vld [vmem:[%s215 + $0x40] sm:$0xff]
        %v279 = vld [vmem:[%s215 + $0x48] sm:$0xff]
        %v280 = vld [vmem:[%s215 + $0x50] sm:$0xff]
        %v281 = vld [vmem:[%s215 + $0x58] sm:$0xff]
        %v282 = vld [vmem:[%s215 + $0x60] sm:$0xff]
        %v283 = vld [vmem:[%s215 + $0x68] sm:$0xff]
        %v284 = vld [vmem:[%s215 + $0x70] sm:$0xff]
        %v285 = vld [vmem:[%s215 + $0x78] sm:$0xff]
        %v286 = vld [vmem:[%s215 + $0x80] sm:$0xff]
        %v287 = vld [vmem:[%s215 + $0x88] sm:$0xff]
        %v288 = vld [vmem:[%s215 + $0x90] sm:$0xff]
        %v289 = vld [vmem:[%s215 + $0x98] sm:$0xff]
        %v290 = vld [vmem:[%s215 + $0xa0] sm:$0xff]
        %v291 = vld [vmem:[%s215 + $0xa8] sm:$0xff]
        %v292 = vld [vmem:[%s215 + $0xb0] sm:$0xff]
        %v293 = vld [vmem:[%s215 + $0xb8] sm:$0xff]
        %v294 = vld [vmem:[%s215 + $0xc0] sm:$0xff]
        %v295 = vld [vmem:[%s215 + $0xc8] sm:$0xff]
        %v296 = vld [vmem:[%s215 + $0xd0] sm:$0xff]
        %v297 = vld [vmem:[%s215 + $0xd8] sm:$0xff]
        %v298 = vld [vmem:[%s215 + $0xe0] sm:$0xff]
        %v299 = vld [vmem:[%s215 + $0xe8] sm:$0xff]
        %v300 = vld [vmem:[%s215 + $0xf0] sm:$0xff]
        %v301 = vld [vmem:[%s215 + $0xf8] sm:$0xff]
        %v302 = vld [vmem:[%s215 + $0x100] sm:$0xff]
        %v303 = vld [vmem:[%s215 + $0x108] sm:$0xff]
        %v304 = vld [vmem:[%s215 + $0x110] sm:$0xff]
        %v305 = vld [vmem:[%s215 + $0x118] sm:$0xff]
        %v306 = vld [vmem:[%s215 + $0x120] sm:$0xff]
        %v307 = vld [vmem:[%s215 + $0x128] sm:$0xff]
        %v308 = vld [vmem:[%s215 + $0x130] sm:$0xff]
        %v309 = vld [vmem:[%s215 + $0x138] sm:$0xff]
        %v310 = vld [vmem:[%s215 + $0x140] sm:$0xff]
        %v311 = vld [vmem:[%s215 + $0x148] sm:$0xff]
        %v312 = vld [vmem:[%s215 + $0x150] sm:$0xff]
        %v313 = vld [vmem:[%s215 + $0x158] sm:$0xff]
        %v314 = vld [vmem:[%s215 + $0x160] sm:$0xff]
        %v315 = vld [vmem:[%s215 + $0x168] sm:$0xff]
        %v316 = vld [vmem:[%s215 + $0x170] sm:$0xff]
        %v317 = vld [vmem:[%s215 + $0x178] sm:$0xff]
        %v318 = vld [vmem:[%s215 + $0x180] sm:$0xff]
        %v319 = vld [vmem:[%s224] sm:$0xff]
        %v320 = vld [vmem:[%s224 + $0x8] sm:$0xff]
        %v321 = vld [vmem:[%s224 + $0x10] sm:$0xff]
        %v322 = vld [vmem:[%s224 + $0x18] sm:$0xff]
        %v323 = vld [vmem:[%s224 + $0x20] sm:$0xff]
        %v324 = vld [vmem:[%s224 + $0x28] sm:$0xff]
        %v325 = vld [vmem:[%s224 + $0x30] sm:$0xff]
        %v326 = vld [vmem:[%s224 + $0x38] sm:$0xff]
        %v327 = vld [vmem:[%s224 + $0x40] sm:$0xff]
        %v328 = vld [vmem:[%s224 + $0x48] sm:$0xff]
        %v329 = vld [vmem:[%s224 + $0x50] sm:$0xff]
        %v330 = vld [vmem:[%s224 + $0x58] sm:$0xff]
        %v331 = vld [vmem:[%s224 + $0x60] sm:$0xff]
        %v332 = vld [vmem:[%s224 + $0x68] sm:$0xff]
        %v333 = vld [vmem:[%s224 + $0x70] sm:$0xff]
        %v334 = vld [vmem:[%s224 + $0x78] sm:$0xff]
        %v335 = vld [vmem:[%s224 + $0x80] sm:$0xff]
        %v336 = vld [vmem:[%s224 + $0x88] sm:$0xff]
        %v337 = vld [vmem:[%s224 + $0x90] sm:$0xff]
        %v338 = vld [vmem:[%s224 + $0x98] sm:$0xff]
        %v339 = vld [vmem:[%s224 + $0xa0] sm:$0xff]
        %v340 = vld [vmem:[%s224 + $0xa8] sm:$0xff]
        %v341 = vld [vmem:[%s224 + $0xb0] sm:$0xff]
        %v342 = vld [vmem:[%s224 + $0xb8] sm:$0xff]
        %v343 = vld [vmem:[%s224 + $0xc0] sm:$0xff]
        %v344 = vld [vmem:[%s224 + $0xc8] sm:$0xff]
        %v345 = vld [vmem:[%s224 + $0xd0] sm:$0xff]
        %v346 = vld [vmem:[%s224 + $0xd8] sm:$0xff]
        %v347 = vld [vmem:[%s224 + $0xe0] sm:$0xff]
        %v348 = vld [vmem:[%s224 + $0xe8] sm:$0xff]
        %v349 = vld [vmem:[%s224 + $0xf0] sm:$0xff]
        %v350 = vld [vmem:[%s224 + $0xf8] sm:$0xff]
        %v351 = vld [vmem:[%s224 + $0x100] sm:$0xff]
        %v352 = vld [vmem:[%s224 + $0x108] sm:$0xff]
        %v353 = vld [vmem:[%s224 + $0x110] sm:$0xff]
        %v354 = vld [vmem:[%s224 + $0x118] sm:$0xff]
        %v355 = vld [vmem:[%s224 + $0x120] sm:$0xff]
        %v356 = vld [vmem:[%s224 + $0x128] sm:$0xff]
        %v357 = vld [vmem:[%s224 + $0x130] sm:$0xff]
        %v358 = vld [vmem:[%s224 + $0x138] sm:$0xff]
        %v359 = vld [vmem:[%s224 + $0x140] sm:$0xff]
        %v360 = vld [vmem:[%s224 + $0x148] sm:$0xff]
        %v361 = vld [vmem:[%s224 + $0x150] sm:$0xff]
        %v362 = vld [vmem:[%s224 + $0x158] sm:$0xff]
        %v363 = vld [vmem:[%s224 + $0x160] sm:$0xff]
        %v364 = vld [vmem:[%s224 + $0x168] sm:$0xff]
        %v365 = vld [vmem:[%s224 + $0x170] sm:$0xff]
        %v366 = vld [vmem:[%s224 + $0x178] sm:$0xff]
        %v367 = vld [vmem:[%s224 + $0x180] sm:$0xff]
        %v368 = vadd.f32 %v270, %v319
        %v369 = vadd.f32 %v271, %v320
        %v370 = vadd.f32 %v272, %v321
        %v371 = vadd.f32 %v273, %v322
        %v372 = vadd.f32 %v274, %v323
        %v373 = vadd.f32 %v275, %v324
        %v374 = vadd.f32 %v276, %v325
        %v375 = vadd.f32 %v277, %v326
        %v376 = vadd.f32 %v278, %v327
        %v377 = vadd.f32 %v279, %v328
        %v378 = vadd.f32 %v280, %v329
        %v379 = vadd.f32 %v281, %v330
        %v380 = vadd.f32 %v282, %v331
        %v381 = vadd.f32 %v283, %v332
        %v382 = vadd.f32 %v284, %v333
        %v383 = vadd.f32 %v285, %v334
        %v384 = vadd.f32 %v286, %v335
        %v385 = vadd.f32 %v287, %v336
        %v386 = vadd.f32 %v288, %v337
        %v387 = vadd.f32 %v289, %v338
        %v388 = vadd.f32 %v290, %v339
        %v389 = vadd.f32 %v291, %v340
        %v390 = vadd.f32 %v292, %v341
        %v391 = vadd.f32 %v293, %v342
        %v392 = vadd.f32 %v294, %v343
        %v393 = vadd.f32 %v295, %v344
        %v394 = vadd.f32 %v296, %v345
        %v395 = vadd.f32 %v297, %v346
        %v396 = vadd.f32 %v298, %v347
        %v397 = vadd.f32 %v299, %v348
        %v398 = vadd.f32 %v300, %v349
        %v399 = vadd.f32 %v301, %v350
        %v400 = vadd.f32 %v302, %v351
        %v401 = vadd.f32 %v303, %v352
        %v402 = vadd.f32 %v304, %v353
        %v403 = vadd.f32 %v305, %v354
        %v404 = vadd.f32 %v306, %v355
        %v405 = vadd.f32 %v307, %v356
        %v406 = vadd.f32 %v308, %v357
        %v407 = vadd.f32 %v309, %v358
        %v408 = vadd.f32 %v310, %v359
        %v409 = vadd.f32 %v311, %v360
        %v410 = vadd.f32 %v312, %v361
        %v411 = vadd.f32 %v313, %v362
        %v412 = vadd.f32 %v314, %v363
        %v413 = vadd.f32 %v315, %v364
        %v414 = vadd.f32 %v316, %v365
        %v415 = vadd.f32 %v317, %v366
        %v416 = vadd.f32 %v318, %v367
        %v417 = vld [vmem:[%s233] sm:$0xff]
        %v418 = vld [vmem:[%s233 + $0x8] sm:$0xff]
        %v419 = vld [vmem:[%s233 + $0x10] sm:$0xff]
        %v420 = vld [vmem:[%s233 + $0x18] sm:$0xff]
        %v421 = vld [vmem:[%s233 + $0x20] sm:$0xff]
        %v422 = vld [vmem:[%s233 + $0x28] sm:$0xff]
        %v423 = vld [vmem:[%s233 + $0x30] sm:$0xff]
        %v424 = vld [vmem:[%s233 + $0x38] sm:$0xff]
        %v425 = vld [vmem:[%s233 + $0x40] sm:$0xff]
        %v426 = vld [vmem:[%s233 + $0x48] sm:$0xff]
        %v427 = vld [vmem:[%s233 + $0x50] sm:$0xff]
        %v428 = vld [vmem:[%s233 + $0x58] sm:$0xff]
        %v429 = vld [vmem:[%s233 + $0x60] sm:$0xff]
        %v430 = vld [vmem:[%s233 + $0x68] sm:$0xff]
        %v431 = vld [vmem:[%s233 + $0x70] sm:$0xff]
        %v432 = vld [vmem:[%s233 + $0x78] sm:$0xff]
        %v433 = vld [vmem:[%s233 + $0x80] sm:$0xff]
        %v434 = vld [vmem:[%s233 + $0x88] sm:$0xff]
        %v435 = vld [vmem:[%s233 + $0x90] sm:$0xff]
        %v436 = vld [vmem:[%s233 + $0x98] sm:$0xff]
        %v437 = vld [vmem:[%s233 + $0xa0] sm:$0xff]
        %v438 = vld [vmem:[%s233 + $0xa8] sm:$0xff]
        %v439 = vld [vmem:[%s233 + $0xb0] sm:$0xff]
        %v440 = vld [vmem:[%s233 + $0xb8] sm:$0xff]
        %v441 = vld [vmem:[%s233 + $0xc0] sm:$0xff]
        %v442 = vld [vmem:[%s233 + $0xc8] sm:$0xff]
        %v443 = vld [vmem:[%s233 + $0xd0] sm:$0xff]
        %v444 = vld [vmem:[%s233 + $0xd8] sm:$0xff]
        %v445 = vld [vmem:[%s233 + $0xe0] sm:$0xff]
        %v446 = vld [vmem:[%s233 + $0xe8] sm:$0xff]
        %v447 = vld [vmem:[%s233 + $0xf0] sm:$0xff]
        %v448 = vld [vmem:[%s233 + $0xf8] sm:$0xff]
        %v449 = vld [vmem:[%s233 + $0x100] sm:$0xff]
        %v450 = vld [vmem:[%s233 + $0x108] sm:$0xff]
        %v451 = vld [vmem:[%s233 + $0x110] sm:$0xff]
        %v452 = vld [vmem:[%s233 + $0x118] sm:$0xff]
        %v453 = vld [vmem:[%s233 + $0x120] sm:$0xff]
        %v454 = vld [vmem:[%s233 + $0x128] sm:$0xff]
        %v455 = vld [vmem:[%s233 + $0x130] sm:$0xff]
        %v456 = vld [vmem:[%s233 + $0x138] sm:$0xff]
        %v457 = vld [vmem:[%s233 + $0x140] sm:$0xff]
        %v458 = vld [vmem:[%s233 + $0x148] sm:$0xff]
        %v459 = vld [vmem:[%s233 + $0x150] sm:$0xff]
        %v460 = vld [vmem:[%s233 + $0x158] sm:$0xff]
        %v461 = vld [vmem:[%s233 + $0x160] sm:$0xff]
        %v462 = vld [vmem:[%s233 + $0x168] sm:$0xff]
        %v463 = vld [vmem:[%s233 + $0x170] sm:$0xff]
        %v464 = vld [vmem:[%s233 + $0x178] sm:$0xff]
        %v465 = vld [vmem:[%s233 + $0x180] sm:$0xff]
        %v466 = vadd.f32 %v368, %v417
        %v467 = vadd.f32 %v369, %v418
        %v468 = vadd.f32 %v370, %v419
        %v469 = vadd.f32 %v371, %v420
        %v470 = vadd.f32 %v372, %v421
        %v471 = vadd.f32 %v373, %v422
        %v472 = vadd.f32 %v374, %v423
        %v473 = vadd.f32 %v375, %v424
        %v474 = vadd.f32 %v376, %v425
        %v475 = vadd.f32 %v377, %v426
        %v476 = vadd.f32 %v378, %v427
        %v477 = vadd.f32 %v379, %v428
        %v478 = vadd.f32 %v380, %v429
        %v479 = vadd.f32 %v381, %v430
        %v480 = vadd.f32 %v382, %v431
        %v481 = vadd.f32 %v383, %v432
        %v482 = vadd.f32 %v384, %v433
        %v483 = vadd.f32 %v385, %v434
        %v484 = vadd.f32 %v386, %v435
        %v485 = vadd.f32 %v387, %v436
        %v486 = vadd.f32 %v388, %v437
        %v487 = vadd.f32 %v389, %v438
        %v488 = vadd.f32 %v390, %v439
        %v489 = vadd.f32 %v391, %v440
        %v490 = vadd.f32 %v392, %v441
        %v491 = vadd.f32 %v393, %v442
        %v492 = vadd.f32 %v394, %v443
        %v493 = vadd.f32 %v395, %v444
        %v494 = vadd.f32 %v396, %v445
        %v495 = vadd.f32 %v397, %v446
        %v496 = vadd.f32 %v398, %v447
        %v497 = vadd.f32 %v399, %v448
        %v498 = vadd.f32 %v400, %v449
        %v499 = vadd.f32 %v401, %v450
        %v500 = vadd.f32 %v402, %v451
        %v501 = vadd.f32 %v403, %v452
        %v502 = vadd.f32 %v404, %v453
        %v503 = vadd.f32 %v405, %v454
        %v504 = vadd.f32 %v406, %v455
        %v505 = vadd.f32 %v407, %v456
        %v506 = vadd.f32 %v408, %v457
        %v507 = vadd.f32 %v409, %v458
        %v508 = vadd.f32 %v410, %v459
        %v509 = vadd.f32 %v411, %v460
        %v510 = vadd.f32 %v412, %v461
        %v511 = vadd.f32 %v413, %v462
        %v512 = vadd.f32 %v414, %v463
        %v513 = vadd.f32 %v415, %v464
        %v514 = vadd.f32 %v416, %v465
        %515 = vst [vmem:[%s265] sm:$0xff] %v466
        %516 = vst [vmem:[%s265 + $0x8] sm:$0xff] %v467
        %517 = vst [vmem:[%s265 + $0x10] sm:$0xff] %v468
        %518 = vst [vmem:[%s265 + $0x18] sm:$0xff] %v469
        %519 = vst [vmem:[%s265 + $0x20] sm:$0xff] %v470
        %520 = vst [vmem:[%s265 + $0x28] sm:$0xff] %v471
        %521 = vst [vmem:[%s265 + $0x30] sm:$0xff] %v472
        %522 = vst [vmem:[%s265 + $0x38] sm:$0xff] %v473
        %523 = vst [vmem:[%s265 + $0x40] sm:$0xff] %v474
        %524 = vst [vmem:[%s265 + $0x48] sm:$0xff] %v475
        %525 = vst [vmem:[%s265 + $0x50] sm:$0xff] %v476
        %526 = vst [vmem:[%s265 + $0x58] sm:$0xff] %v477
        %527 = vst [vmem:[%s265 + $0x60] sm:$0xff] %v478
        %528 = vst [vmem:[%s265 + $0x68] sm:$0xff] %v479
        %529 = vst [vmem:[%s265 + $0x70] sm:$0xff] %v480
        %530 = vst [vmem:[%s265 + $0x78] sm:$0xff] %v481
        %531 = vst [vmem:[%s265 + $0x80] sm:$0xff] %v482
        %532 = vst [vmem:[%s265 + $0x88] sm:$0xff] %v483
        %533 = vst [vmem:[%s265 + $0x90] sm:$0xff] %v484
        %534 = vst [vmem:[%s265 + $0x98] sm:$0xff] %v485
        %535 = vst [vmem:[%s265 + $0xa0] sm:$0xff] %v486
        %536 = vst [vmem:[%s265 + $0xa8] sm:$0xff] %v487
        %537 = vst [vmem:[%s265 + $0xb0] sm:$0xff] %v488
        %538 = vst [vmem:[%s265 + $0xb8] sm:$0xff] %v489
        %539 = vst [vmem:[%s265 + $0xc0] sm:$0xff] %v490
        %540 = vst [vmem:[%s265 + $0xc8] sm:$0xff] %v491
        %541 = vst [vmem:[%s265 + $0xd0] sm:$0xff] %v492
        %542 = vst [vmem:[%s265 + $0xd8] sm:$0xff] %v493
        %543 = vst [vmem:[%s265 + $0xe0] sm:$0xff] %v494
        %544 = vst [vmem:[%s265 + $0xe8] sm:$0xff] %v495
        %545 = vst [vmem:[%s265 + $0xf0] sm:$0xff] %v496
        %546 = vst [vmem:[%s265 + $0xf8] sm:$0xff] %v497
        %547 = vst [vmem:[%s265 + $0x100] sm:$0xff] %v498
        %548 = vst [vmem:[%s265 + $0x108] sm:$0xff] %v499
        %549 = vst [vmem:[%s265 + $0x110] sm:$0xff] %v500
        %550 = vst [vmem:[%s265 + $0x118] sm:$0xff] %v501
        %551 = vst [vmem:[%s265 + $0x120] sm:$0xff] %v502
        %552 = vst [vmem:[%s265 + $0x128] sm:$0xff] %v503
        %553 = vst [vmem:[%s265 + $0x130] sm:$0xff] %v504
        %554 = vst [vmem:[%s265 + $0x138] sm:$0xff] %v505
        %555 = vst [vmem:[%s265 + $0x140] sm:$0xff] %v506
        %556 = vst [vmem:[%s265 + $0x148] sm:$0xff] %v507
        %557 = vst [vmem:[%s265 + $0x150] sm:$0xff] %v508
        %558 = vst [vmem:[%s265 + $0x158] sm:$0xff] %v509
        %559 = vst [vmem:[%s265 + $0x160] sm:$0xff] %v510
        %560 = vst [vmem:[%s265 + $0x168] sm:$0xff] %v511
        %561 = vst [vmem:[%s265 + $0x170] sm:$0xff] %v512
        %562 = vst [vmem:[%s265 + $0x178] sm:$0xff] %v513
        %563 = vst [vmem:[%s265 + $0x180] sm:$0xff] %v514
        %s564 = sand.u32 %s109, 1
        %s565 = scalar_lea.sflag [#allocation4], %s564
        %s566 = sand.u32 %s109, 1
        %s567 = smul.addr %s566, 392
        %s568 = scalar_lea.vmem [#allocation8], %s567
        // Predicated region
        $region45: #{tpu_custom_call.1} parent=31 // pred_check
          %p569 = pneg %p119
        $region46: #{tpu_custom_call.1} parent=31 // pred_check_branch
          %571 = sbr.rel (%p569) target = $region48
        $region47: #{tpu_custom_call.1} parent=31 // pred_region
          %s572 = smul.u32 49, %s23
          %s574 = ssub.s32 6272, 6272
          %575 = vsyncadd %s565, %s574
          %s576 = smul.addr %s572, 128
          %s577 = scalar_lea.hbm %s3, %s576
          %s578 = sshll.u32 %s568, 4
          %s579 = int_to_ptr.vmem [resolvable:$true] %s578
          %584 = dma.vmem_to_hbm [thread:$0]  %s579, 6272, %s577, %s565, 128, 128, 8
        $region48: #{tpu_custom_call.1} parent=31 // pred_fallthru
          _
      $region32: #{tpu_custom_call.1} parent=5 // pred_fallthru
        _
      %p585 = scmp.le.s32.totalorder 2, %s18
      // Predicated region
      $region49: #{tpu_custom_call.1} parent=5 // pred_check
        %p586 = pneg %p585
      $region50: #{tpu_custom_call.1} parent=5 // pred_check_branch
        %588 = sbr.rel (%p586) target = $region52
      $region51: #{tpu_custom_call.1} parent=5 // pred_region
        %s589 = ssub.s32 %s18, 2
        // Predicated region
        $region53: #{tpu_custom_call.1} parent=51 // pred_check
          %p590 = pneg %p125
        $region54: #{tpu_custom_call.1} parent=51 // pred_check_branch
          %592 = sbr.rel (%p590) target = $region56
        $region55: #{tpu_custom_call.1} parent=51 // pred_region
          %s593 = sand.u32 %s110, 1
          %s594 = scalar_lea.sflag [#allocation4], %s593
          %s595 = sand.u32 %s110, 1
          %s596 = smul.addr %s595, 392
          %s597 = scalar_lea.vmem [#allocation8], %s596
          %598 = dma.done %s594, 6272
        $region56: #{tpu_custom_call.1} parent=51 // pred_fallthru
          _
      $region52: #{tpu_custom_call.1} parent=5 // pred_fallthru
        _
    $region6: #{tpu_custom_call.1} parent=1 // loop_footer
      %s22 = sadd.s32 1, %s18
    $region7: #{tpu_custom_call.1} parent=1 // loop_footer_branch
      %17 = sbr.rel target = $region3
    $region8: #{tpu_custom_call.1} parent=1 // loop_exit
      _
    %599 = vsyncpa [#allocation3], 1
    %s600 = scalar_lea.sflag [#allocation3], 1
    %601 = vsyncpa %s600, 1
    %602 = vsyncpa [#allocation6], 1
    %s603 = scalar_lea.sflag [#allocation6], 1
    %604 = vsyncpa %s603, 1
    %605 = vsyncpa [#allocation4], 1
    %s606 = scalar_lea.sflag [#allocation4], 1
    %607 = vsyncpa %s606, 1

</llo_original>
